<compile_context>
chip_gen: v7x
topology: tpu7x:2x2x1
jax: 0.10.0
libtpu: 0.0.40
codegen_flags: <defaults>
</compile_context>

<pallas_src>
import jax
import jax.numpy as jnp
from jax.experimental import pallas as pl
from jax.experimental.pallas import tpu as pltpu

LANE = 128          # vreg lane width
BF16_SUBLANE = 16   # bf16 packs two rows per sublane -> round tiny batch tiles to 16


def _round_up(n, m):
    return (n + m - 1) // m * m


def mlp_kernel(x_ref, w1_ref, b1_ref, w2_ref, b2_ref, w3_ref, b3_ref, out_ref):
    # ---- fc1 + relu ----  (cast f32 x -> bf16 in-kernel; MXU bf16 path, f32 accumulation)
    x = x_ref[...].astype(jnp.bfloat16)
    h1 = jnp.dot(x, w1_ref[...], preferred_element_type=jnp.float32)
    h1 = jnp.maximum(h1 + b1_ref[...], 0.0)           # f32 elementwise (v5e has no bf16 VPU)

    # ---- fc2 + relu ----
    h2 = jnp.dot(h1.astype(jnp.bfloat16), w2_ref[...], preferred_element_type=jnp.float32)
    h2 = jnp.maximum(h2 + b2_ref[...], 0.0)

    # ---- fc3 ----  (padded bias columns carry -1e30, so padded logits vanish in the softmax)
    logits = jnp.dot(h2.astype(jnp.bfloat16), w3_ref[...], preferred_element_type=jnp.float32)
    logits = logits + b3_ref[...]

    # ---- log_softmax over the feature axis ----
    m = jnp.max(logits, axis=1, keepdims=True)
    shifted = logits - m
    lse = jnp.log(jnp.sum(jnp.exp(shifted), axis=1, keepdims=True))
    out_ref[...] = (shifted - lse).astype(out_ref.dtype)


def init_params(key, in_sz=784, out_sz=10, layers=(120, 84)):
    """PyTorch nn.Linear-style init (uniform +/- 1/sqrt(fan_in)); weights stored (in, out)."""
    dims = [(in_sz, layers[0]), (layers[0], layers[1]), (layers[1], out_sz)]
    params = {}
    for i, (fin, fout) in enumerate(dims, start=1):
        key, kw, kb = jax.random.split(key, 3)
        bound = 1.0 / jnp.sqrt(jnp.float32(fin))
        params[f"w{i}"] = jax.random.uniform(kw, (fin, fout), jnp.float32, -bound, bound)
        params[f"b{i}"] = jax.random.uniform(kb, (1, fout), jnp.float32, -bound, bound)
    return params


def prepare_params(params, in_sz=784, out_sz=10, layers=(120, 84)):
    """One-time prep: lane-pad output dims, cast matmul weights to bf16 (biases stay f32).

    * w1 keeps its ragged K dim (784) -- padding it only adds dead HBM read traffic.
    * w2/w3 K dims are the previous layer's lane-padded width (zero rows for padded channels).
    * b3's padded columns are set to -1e30 so the log_softmax mask is baked in (finite, so no
      inf-inf NaN path); all other padded bias/weight entries are zero.
    """
    dims = [(in_sz, layers[0]), (layers[0], layers[1]), (layers[1], out_sz)]
    prepared = {}
    neg_fill = -1e30
    n_layers = len(dims)
    for i, (fin, fout) in enumerate(dims, start=1):
        fin_p = fin if i == 1 else _round_up(fin, LANE)
        fout_p = _round_up(fout, LANE)
        w = jnp.zeros((fin_p, fout_p), jnp.bfloat16).at[:fin, :fout].set(
            params[f"w{i}"].astype(jnp.bfloat16))
        bias_fill = neg_fill if i == n_layers else 0.0
        b = jnp.full((1, fout_p), bias_fill, jnp.float32).at[:, :fout].set(params[f"b{i}"])
        prepared[f"w{i}"] = w
        prepared[f"b{i}"] = b
    return prepared


def mlp_forward(x, prepared, out_sz=10, batch_tile=1024):
    """x: (B, in_sz) f32 (fed to the kernel as-is; no wrapper pad/cast pass)."""
    B, in_sz = x.shape
    out_p = prepared["w3"].shape[1]

    # Big batch tile amortizes the ~0.35 us per-grid-step overhead; tiny batches just take one
    # 16-row (bf16-sublane-aligned) tile.  Partial tail blocks are masked by Mosaic.
    tb = batch_tile if B >= batch_tile else _round_up(B, BF16_SUBLANE)
    grid = (pl.cdiv(B, tb),)

    def x_map(i):
        return (i, 0)

    def resident(i):          # weights/biases stay VMEM-resident across the batch grid
        return (0, 0)

    out_padded = pl.pallas_call(
        mlp_kernel,
        out_shape=jax.ShapeDtypeStruct((B, out_p), jnp.float32),
        grid=grid,
        in_specs=[
            pl.BlockSpec((tb, in_sz), x_map),                 # full ragged K, no padding
            pl.BlockSpec(prepared["w1"].shape, resident),
            pl.BlockSpec(prepared["b1"].shape, resident),
            pl.BlockSpec(prepared["w2"].shape, resident),
            pl.BlockSpec(prepared["b2"].shape, resident),
            pl.BlockSpec(prepared["w3"].shape, resident),
            pl.BlockSpec(prepared["b3"].shape, resident),
        ],
        out_specs=pl.BlockSpec((tb, out_p), x_map),           # lane-dense (128) output slab
        compiler_params=pltpu.CompilerParams(
            dimension_semantics=("parallel",),                # v7x: both TCs consume grid steps
            vmem_limit_bytes=32 * 1024 * 1024,                # clears v5e's 16 MiB default; fits v7x
        ),
    )(x, prepared["w1"], prepared["b1"], prepared["w2"], prepared["b2"],
      prepared["w3"], prepared["b3"])

    return out_padded[:, :out_sz]


def reference_forward(x, p):
    """Pure-JAX f32 reference matching the PyTorch module."""
    h1 = jnp.maximum(x @ p["w1"] + p["b1"], 0.0)
    h2 = jnp.maximum(h1 @ p["w2"] + p["b2"], 0.0)
    logits = h2 @ p["w3"] + p["b3"]
    return jax.nn.log_softmax(logits, axis=1)


if __name__ == "__main__":
    key = jax.random.PRNGKey(0)
    key, kx = jax.random.split(key)

    B, IN_SZ, OUT_SZ = 4, 784, 10            # MNIST-like: 784 = 28*28 flattened
    LAYERS = (120, 84)

    params = init_params(key, in_sz=IN_SZ, out_sz=OUT_SZ, layers=LAYERS)
    prepared = prepare_params(params, in_sz=IN_SZ, out_sz=OUT_SZ, layers=LAYERS)
    x = jax.random.normal(kx, (B, IN_SZ), jnp.float32)

    out = mlp_forward(x, prepared, out_sz=OUT_SZ)
    out = jax.block_until_ready(out)

    ref = reference_forward(x, params)
    assert out.shape == (B, OUT_SZ)
    # Loose tolerance accounts for bf16 matmul operands (accumulation is still f32).
    assert jnp.allclose(out, ref, atol=5e-2, rtol=5e-2), "mismatch vs JAX reference"

    print("KERNEL_OK")
</pallas_src>

<mosaic_0001>
module attributes {stable_mosaic.version = 11 : i64} {
  func.func @mlp_kernel(%arg0: i32, %arg1: memref<16x784xf32, #tpu.memory_space<vmem>>, %arg2: memref<784x128xbf16, #tpu.memory_space<vmem>>, %arg3: memref<1x128xf32, #tpu.memory_space<vmem>>, %arg4: memref<128x128xbf16, #tpu.memory_space<vmem>>, %arg5: memref<1x128xf32, #tpu.memory_space<vmem>>, %arg6: memref<128x128xbf16, #tpu.memory_space<vmem>>, %arg7: memref<1x128xf32, #tpu.memory_space<vmem>>, %arg8: memref<16x128xf32, #tpu.memory_space<vmem>>) attributes {dimension_semantics = [#tpu.dimension_semantics<parallel>], iteration_bounds = array<i64: 1>, scalar_prefetch = 0 : i64, scratch_operands = 0 : i64, tpu.core_type = #tpu.core_type<tc>, window_params = [{transform_indices = @transform_0, window_bounds = array<i64: 16, 784>}, {pipeline_mode = #tpu.pipeline_mode<synchronous>, transform_indices = @transform_1, window_bounds = array<i64: 784, 128>}, {pipeline_mode = #tpu.pipeline_mode<synchronous>, transform_indices = @transform_2, window_bounds = array<i64: 1, 128>}, {pipeline_mode = #tpu.pipeline_mode<synchronous>, transform_indices = @transform_3, window_bounds = array<i64: 128, 128>}, {pipeline_mode = #tpu.pipeline_mode<synchronous>, transform_indices = @transform_4, window_bounds = array<i64: 1, 128>}, {pipeline_mode = #tpu.pipeline_mode<synchronous>, transform_indices = @transform_5, window_bounds = array<i64: 128, 128>}, {pipeline_mode = #tpu.pipeline_mode<synchronous>, transform_indices = @transform_6, window_bounds = array<i64: 1, 128>}, {transform_indices = @transform_7, window_bounds = array<i64: 16, 128>}]} {
    %c0 = arith.constant 0 : index
    %c0_0 = arith.constant 0 : index
    %0 = vector.load %arg1[%c0, %c0_0] : memref<16x784xf32, #tpu.memory_space<vmem>>, vector<16x784xf32>
    %1 = arith.truncf %0 : vector<16x784xf32> to vector<16x784xbf16>
    %c0_1 = arith.constant 0 : index
    %c0_2 = arith.constant 0 : index
    %2 = vector.load %arg2[%c0_1, %c0_2] : memref<784x128xbf16, #tpu.memory_space<vmem>>, vector<784x128xbf16>
    %cst = arith.constant dense<0.000000e+00> : vector<16x128xf32>
    %3 = tpu.matmul %1, %2, %cst {dimension_numbers = #tpu.dot_dimension_numbers<[1], [0], [0], [1], [0, 0, 1, 1], [], []>} : vector<16x784xbf16>, vector<784x128xbf16>, vector<16x128xf32> -> vector<16x128xf32>
    %c0_3 = arith.constant 0 : index
    %c0_4 = arith.constant 0 : index
    %4 = vector.load %arg3[%c0_3, %c0_4] : memref<1x128xf32, #tpu.memory_space<vmem>>, vector<1x128xf32>
    %5 = vector.broadcast %4 : vector<1x128xf32> to vector<16x128xf32>
    %6 = arith.addf %3, %5 : vector<16x128xf32>
    %cst_5 = arith.constant 0.000000e+00 : f32
    %7 = vector.broadcast %cst_5 : f32 to vector<16x128xf32>
    %8 = arith.maximumf %6, %7 : vector<16x128xf32>
    %9 = arith.truncf %8 : vector<16x128xf32> to vector<16x128xbf16>
    %c0_6 = arith.constant 0 : index
    %c0_7 = arith.constant 0 : index
    %10 = vector.load %arg4[%c0_6, %c0_7] : memref<128x128xbf16, #tpu.memory_space<vmem>>, vector<128x128xbf16>
    %cst_8 = arith.constant dense<0.000000e+00> : vector<16x128xf32>
    %11 = tpu.matmul %9, %10, %cst_8 {dimension_numbers = #tpu.dot_dimension_numbers<[1], [0], [0], [1], [0, 0, 1, 1], [], []>} : vector<16x128xbf16>, vector<128x128xbf16>, vector<16x128xf32> -> vector<16x128xf32>
    %c0_9 = arith.constant 0 : index
    %c0_10 = arith.constant 0 : index
    %12 = vector.load %arg5[%c0_9, %c0_10] : memref<1x128xf32, #tpu.memory_space<vmem>>, vector<1x128xf32>
    %13 = vector.broadcast %12 : vector<1x128xf32> to vector<16x128xf32>
    %14 = arith.addf %11, %13 : vector<16x128xf32>
    %cst_11 = arith.constant 0.000000e+00 : f32
    %15 = vector.broadcast %cst_11 : f32 to vector<16x128xf32>
    %16 = arith.maximumf %14, %15 : vector<16x128xf32>
    %17 = arith.truncf %16 : vector<16x128xf32> to vector<16x128xbf16>
    %c0_12 = arith.constant 0 : index
    %c0_13 = arith.constant 0 : index
    %18 = vector.load %arg6[%c0_12, %c0_13] : memref<128x128xbf16, #tpu.memory_space<vmem>>, vector<128x128xbf16>
    %cst_14 = arith.constant dense<0.000000e+00> : vector<16x128xf32>
    %19 = tpu.matmul %17, %18, %cst_14 {dimension_numbers = #tpu.dot_dimension_numbers<[1], [0], [0], [1], [0, 0, 1, 1], [], []>} : vector<16x128xbf16>, vector<128x128xbf16>, vector<16x128xf32> -> vector<16x128xf32>
    %c0_15 = arith.constant 0 : index
    %c0_16 = arith.constant 0 : index
    %20 = vector.load %arg7[%c0_15, %c0_16] : memref<1x128xf32, #tpu.memory_space<vmem>>, vector<1x128xf32>
    %21 = vector.broadcast %20 : vector<1x128xf32> to vector<16x128xf32>
    %22 = arith.addf %19, %21 : vector<16x128xf32>
    %cst_17 = arith.constant dense<0xFF800000> : vector<16xf32>
    %23 = vector.multi_reduction <maximumf>, %22, %cst_17 [1] : vector<16x128xf32> to vector<16xf32>
    %24 = vector.shape_cast %23 : vector<16xf32> to vector<16x1xf32>
    %25 = vector.broadcast %24 : vector<16x1xf32> to vector<16x128xf32>
    %26 = arith.subf %22, %25 : vector<16x128xf32>
    %27 = math.exp %26 : vector<16x128xf32>
    %cst_18 = arith.constant dense<0.000000e+00> : vector<16xf32>
    %28 = vector.multi_reduction <add>, %27, %cst_18 [1] : vector<16x128xf32> to vector<16xf32>
    %29 = vector.shape_cast %28 : vector<16xf32> to vector<16x1xf32>
    %30 = math.log %29 : vector<16x1xf32>
    %31 = vector.broadcast %30 : vector<16x1xf32> to vector<16x128xf32>
    %32 = arith.subf %26, %31 : vector<16x128xf32>
    %c0_19 = arith.constant 0 : index
    %c0_20 = arith.constant 0 : index
    %33 = vector.load %arg8[%c0_19, %c0_20] : memref<16x128xf32, #tpu.memory_space<vmem>>, vector<16x128xf32>
    tpu.vector_store %arg8[%c0_19, %c0_20], %32 {strides = array<i32>} : memref<16x128xf32, #tpu.memory_space<vmem>>, vector<16x128xf32>,
    return
  }
  func.func @transform_0(%arg0: i32) -> (i32, i32) {
    %c0_i32 = arith.constant 0 : i32
    %c0_i32_0 = arith.constant 0 : i32
    return %arg0, %c0_i32 : i32, i32
  }
  func.func @transform_1(%arg0: i32) -> (i32, i32) {
    %c0_i32 = arith.constant 0 : i32
    %c0_i32_0 = arith.constant 0 : i32
    %c0_i32_1 = arith.constant 0 : i32
    return %c0_i32, %c0_i32_0 : i32, i32
  }
  func.func @transform_2(%arg0: i32) -> (i32, i32) {
    %c0_i32 = arith.constant 0 : i32
    %c0_i32_0 = arith.constant 0 : i32
    %c0_i32_1 = arith.constant 0 : i32
    return %c0_i32, %c0_i32_0 : i32, i32
  }
  func.func @transform_3(%arg0: i32) -> (i32, i32) {
    %c0_i32 = arith.constant 0 : i32
    %c0_i32_0 = arith.constant 0 : i32
    %c0_i32_1 = arith.constant 0 : i32
    return %c0_i32, %c0_i32_0 : i32, i32
  }
  func.func @transform_4(%arg0: i32) -> (i32, i32) {
    %c0_i32 = arith.constant 0 : i32
    %c0_i32_0 = arith.constant 0 : i32
    %c0_i32_1 = arith.constant 0 : i32
    return %c0_i32, %c0_i32_0 : i32, i32
  }
  func.func @transform_5(%arg0: i32) -> (i32, i32) {
    %c0_i32 = arith.constant 0 : i32
    %c0_i32_0 = arith.constant 0 : i32
    %c0_i32_1 = arith.constant 0 : i32
    return %c0_i32, %c0_i32_0 : i32, i32
  }
  func.func @transform_6(%arg0: i32) -> (i32, i32) {
    %c0_i32 = arith.constant 0 : i32
    %c0_i32_0 = arith.constant 0 : i32
    %c0_i32_1 = arith.constant 0 : i32
    return %c0_i32, %c0_i32_0 : i32, i32
  }
  func.func @transform_7(%arg0: i32) -> (i32, i32) {
    %c0_i32 = arith.constant 0 : i32
    %c0_i32_0 = arith.constant 0 : i32
    return %arg0, %c0_i32 : i32, i32
  }
}

</mosaic_0001>

<llo_original>
// kernel: tpu_custom_call.1
$region0: #{tpu_custom_call.1}
  #allocation0 [shape = 'u32[]', space=smem, size = 0x4, offset = 0x4, fixed_abs, tag = 'smem constant byte address 0x4 - core index']
  #allocation1 [shape = 'u32[144,128]{1,0:T(1,128)}', space=vmem, size = 0x12000, scoped, tag = 'internal scratch']
  %s0 = inlined_call_operand.hbm [shape: f32[4,784], index: 0, kind: input, shape index: {}]
  %s1 = inlined_call_operand.hbm [shape: bf16[784,128], index: 1, kind: input, shape index: {}]
  %s2 = inlined_call_operand.vmem [shape: f32[1,128], index: 2, kind: input, shape index: {}]
  %s3 = inlined_call_operand.hbm [shape: bf16[128,128], index: 3, kind: input, shape index: {}]
  %s4 = inlined_call_operand.vmem [shape: f32[1,128], index: 4, kind: input, shape index: {}]
  %s5 = inlined_call_operand.hbm [shape: bf16[128,128], index: 5, kind: input, shape index: {}]
  %s6 = inlined_call_operand.vmem [shape: f32[1,128], index: 6, kind: input, shape index: {}]
  %s7 = inlined_call_operand.hbm [shape: f32[4,128], index: 7, kind: output, shape index: {}]
  %s8 = sld [smem:[#allocation0]]
  $region54: #{tpu_custom_call.1} parent=0
    _
  %s10 = ssub.s32 1, %s8
  %s11 = scalar_select 0, %s10, %s8
  $region1: #{tpu_custom_call.1} parent=0
    #allocation2 [shape = 'u8[57344]{0}', space=vmem, size = 0xe000, scoped, tag = 'input window, operand 0, single buffered']
    #allocation3 [shape = 's32[1]{0}', space=sflag, size = 0x4, scoped, tag = 'scoped memory for tpu_custom_call.1']
    #allocation4 [shape = 's32[1]{0}', space=sflag, size = 0x4, scoped, tag = 'scoped memory for tpu_custom_call.1']
    #allocation5 [shape = 'u8[200704]{0}', space=vmem, size = 0x31000, scoped, tag = 'input window, operand 1, single buffered']
    #allocation6 [shape = 's32[1]{0}', space=sflag, size = 0x4, scoped, tag = 'scoped memory for tpu_custom_call.1']
    #allocation7 [shape = 'u8[32768]{0}', space=vmem, size = 0x8000, scoped, tag = 'input window, operand 3, single buffered']
    #allocation8 [shape = 'u8[32768]{0}', space=vmem, size = 0x8000, scoped, tag = 'input window, operand 5, single buffered']
    #allocation9 [shape = 's32[1]{0}', space=sflag, size = 0x4, scoped, tag = 'scoped memory for tpu_custom_call.1']
    #allocation10 [shape = 'u8[8192]{0}', space=vmem, size = 0x2000, scoped, tag = 'output window, operand 0, single buffered']
    %12 = vsyncpa [#allocation3], 0
    %13 = vsyncpa [#allocation6], 0
    %14 = vsyncpa [#allocation9], 0
    %15 = vsyncpa [#allocation4], 0
    // Predicated region
    $region2: #{tpu_custom_call.1} parent=1 // pred_check
      _
    $region3: #{tpu_custom_call.1} parent=1 // pred_check_branch
      %17 = sbr.rel (0) target = $region5
    $region4: #{tpu_custom_call.1} parent=1 // pred_region
      %s19 = ssub.s32 1792, 448
      %20 = vsyncadd [#allocation3], %s19
      %s21 = sshll.u32 [#allocation2], 4
      %s22 = int_to_ptr.vmem [resolvable:$true] %s21
      %27 = dma.hbm_to_vmem [thread:$0]  %s0, 448, %s22, [#allocation3], 448, 448, 28
    $region5: #{tpu_custom_call.1} parent=1 // pred_fallthru
      _
    // Predicated region
    $region6: #{tpu_custom_call.1} parent=1 // pred_check
      _
    $region7: #{tpu_custom_call.1} parent=1 // pred_check_branch
      %29 = sbr.rel (0) target = $region9
    $region8: #{tpu_custom_call.1} parent=1 // pred_region
      %s31 = ssub.s32 6272, 6272
      %32 = vsyncadd [#allocation6], %s31
      %s33 = sshll.u32 [#allocation5], 4
      %s34 = int_to_ptr.vmem [resolvable:$true] %s33
      %39 = dma.hbm_to_vmem [thread:$0]  %s1, 6272, %s34, [#allocation6], 64, 64, 4
    $region9: #{tpu_custom_call.1} parent=1 // pred_fallthru
      _
    // Predicated region
    $region10: #{tpu_custom_call.1} parent=1 // pred_check
      _
    $region11: #{tpu_custom_call.1} parent=1 // pred_check_branch
      %41 = sbr.rel (0) target = $region13
    $region12: #{tpu_custom_call.1} parent=1 // pred_region
      _
    $region13: #{tpu_custom_call.1} parent=1 // pred_fallthru
      _
    // Predicated region
    $region14: #{tpu_custom_call.1} parent=1 // pred_check
      _
    $region15: #{tpu_custom_call.1} parent=1 // pred_check_branch
      %43 = sbr.rel (0) target = $region17
    $region16: #{tpu_custom_call.1} parent=1 // pred_region
      %s45 = ssub.s32 1024, 1024
      %46 = vsyncadd [#allocation6], %s45
      %s47 = sshll.u32 [#allocation7], 4
      %s48 = int_to_ptr.vmem [resolvable:$true] %s47
      %53 = dma.hbm_to_vmem [thread:$0]  %s3, 1024, %s48, [#allocation6], 64, 64, 4
    $region17: #{tpu_custom_call.1} parent=1 // pred_fallthru
      _
    // Predicated region
    $region18: #{tpu_custom_call.1} parent=1 // pred_check
      _
    $region19: #{tpu_custom_call.1} parent=1 // pred_check_branch
      %55 = sbr.rel (0) target = $region21
    $region20: #{tpu_custom_call.1} parent=1 // pred_region
      _
    $region21: #{tpu_custom_call.1} parent=1 // pred_fallthru
      _
    // Predicated region
    $region22: #{tpu_custom_call.1} parent=1 // pred_check
      _
    $region23: #{tpu_custom_call.1} parent=1 // pred_check_branch
      %57 = sbr.rel (0) target = $region25
    $region24: #{tpu_custom_call.1} parent=1 // pred_region
      %s59 = ssub.s32 1024, 1024
      %60 = vsyncadd [#allocation9], %s59
      %s61 = sshll.u32 [#allocation8], 4
      %s62 = int_to_ptr.vmem [resolvable:$true] %s61
      %67 = dma.hbm_to_vmem [thread:$0]  %s5, 1024, %s62, [#allocation9], 64, 64, 4
    $region25: #{tpu_custom_call.1} parent=1 // pred_fallthru
      _
    // Predicated region
    $region26: #{tpu_custom_call.1} parent=1 // pred_check
      _
    $region27: #{tpu_custom_call.1} parent=1 // pred_check_branch
      %69 = sbr.rel (0) target = $region29
    $region28: #{tpu_custom_call.1} parent=1 // pred_region
      _
    $region29: #{tpu_custom_call.1} parent=1 // pred_fallthru
      _
    // Predicated region
    $region30: #{tpu_custom_call.1} parent=1 // pred_check
      _
    $region31: #{tpu_custom_call.1} parent=1 // pred_check_branch
      %71 = sbr.rel (0) target = $region33
    $region32: #{tpu_custom_call.1} parent=1 // pred_region
      %72 = dma.done [#allocation3], 1792
    $region33: #{tpu_custom_call.1} parent=1 // pred_fallthru
      _
    // Predicated region
    $region34: #{tpu_custom_call.1} parent=1 // pred_check
      _
    $region35: #{tpu_custom_call.1} parent=1 // pred_check_branch
      %74 = sbr.rel (0) target = $region37
    $region36: #{tpu_custom_call.1} parent=1 // pred_region
      %75 = dma.done [#allocation6], 6272
    $region37: #{tpu_custom_call.1} parent=1 // pred_fallthru
      _
    // Predicated region
    $region38: #{tpu_custom_call.1} parent=1 // pred_check
      _
    $region39: #{tpu_custom_call.1} parent=1 // pred_check_branch
      %77 = sbr.rel (0) target = $region41
    $region40: #{tpu_custom_call.1} parent=1 // pred_region
      %78 = dma.done [#allocation6], 1024
    $region41: #{tpu_custom_call.1} parent=1 // pred_fallthru
      _
    // Predicated region
    $region42: #{tpu_custom_call.1} parent=1 // pred_check
      _
    $region43: #{tpu_custom_call.1} parent=1 // pred_check_branch
      %80 = sbr.rel (0) target = $region45
    $region44: #{tpu_custom_call.1} parent=1 // pred_region
      %81 = dma.done [#allocation9], 1024
    $region45: #{tpu_custom_call.1} parent=1 // pred_fallthru
      _
    %v83 = vld [vmem:[#allocation2] sm:$0xff]
    %v84 = vld [vmem:[#allocation2 + $0x8] sm:$0xff]
    %v85 = vld [vmem:[#allocation2 + $0x10] sm:$0xff]
    %v86 = vld [vmem:[#allocation2 + $0x18] sm:$0xf]
    %v87 = vld [vmem:[#allocation2 + $0x1c] sm:$0xff]
    %v88 = vld [vmem:[#allocation2 + $0x24] sm:$0xff]
    %v89 = vld [vmem:[#allocation2 + $0x2c] sm:$0xff]
    %v90 = vld [vmem:[#allocation2 + $0x34] sm:$0xf]
    %v91 = vld [vmem:[#allocation2 + $0x38] sm:$0xff]
    %v92 = vld [vmem:[#allocation2 + $0x40] sm:$0xff]
    %v93 = vld [vmem:[#allocation2 + $0x48] sm:$0xff]
    %v94 = vld [vmem:[#allocation2 + $0x50] sm:$0xf]
    %v95 = vld [vmem:[#allocation2 + $0x54] sm:$0xff]
    %v96 = vld [vmem:[#allocation2 + $0x5c] sm:$0xff]
    %v97 = vld [vmem:[#allocation2 + $0x64] sm:$0xff]
    %v98 = vld [vmem:[#allocation2 + $0x6c] sm:$0xf]
    %v115 = vcombine.low %v83, %v87
    %v116 = vcombine.high %v83, %v87
    %v117 = vcombine.low %v84, %v88
    %v118 = vcombine.high %v84, %v88
    %v119 = vcombine.low %v85, %v89
    %v120 = vcombine.high %v85, %v89
    %v121 = vcombine.low %v86, %v90
    %v122 = vcombine.low %v91, %v95
    %v123 = vcombine.high %v91, %v95
    %v124 = vcombine.low %v92, %v96
    %v125 = vcombine.high %v92, %v96
    %v126 = vcombine.low %v93, %v97
    %v127 = vcombine.high %v93, %v97
    %v128 = vcombine.low %v94, %v98
    %v143 = vpack.c.bf16 %v122, %v115
    %v144 = vpack.c.bf16 %v123, %v116
    %v145 = vpack.c.bf16 %v124, %v117
    %v146 = vpack.c.bf16 %v125, %v118
    %v147 = vpack.c.bf16 %v126, %v119
    %v148 = vpack.c.bf16 %v127, %v120
    %v149 = vpack.c.bf16 %v128, %v121
    %v150 = vld [vmem:[#allocation5] sm:$0xf]
    %v151 = vld [vmem:[#allocation5 + $0x4] sm:$0xf]
    %v152 = vld [vmem:[#allocation5 + $0x8] sm:$0xf]
    %v153 = vld [vmem:[#allocation5 + $0xc] sm:$0xf]
    %v154 = vld [vmem:[#allocation5 + $0x10] sm:$0xf]
    %v155 = vld [vmem:[#allocation5 + $0x14] sm:$0xf]
    %v156 = vld [vmem:[#allocation5 + $0x18] sm:$0xf]
    %v157 = vld [vmem:[#allocation5 + $0x1c] sm:$0xf]
    %v158 = vld [vmem:[#allocation5 + $0x20] sm:$0xf]
    %v159 = vld [vmem:[#allocation5 + $0x24] sm:$0xf]
    %v160 = vld [vmem:[#allocation5 + $0x28] sm:$0xf]
    %v161 = vld [vmem:[#allocation5 + $0x2c] sm:$0xf]
    %v162 = vld [vmem:[#allocation5 + $0x30] sm:$0xf]
    %v163 = vld [vmem:[#allocation5 + $0x34] sm:$0xf]
    %v164 = vld [vmem:[#allocation5 + $0x38] sm:$0xf]
    %v165 = vld [vmem:[#allocation5 + $0x3c] sm:$0xf]
    %v166 = vld [vmem:[#allocation5 + $0x40] sm:$0xf]
    %v167 = vld [vmem:[#allocation5 + $0x44] sm:$0xf]
    %v168 = vld [vmem:[#allocation5 + $0x48] sm:$0xf]
    %v169 = vld [vmem:[#allocation5 + $0x4c] sm:$0xf]
    %v170 = vld [vmem:[#allocation5 + $0x50] sm:$0xf]
    %v171 = vld [vmem:[#allocation5 + $0x54] sm:$0xf]
    %v172 = vld [vmem:[#allocation5 + $0x58] sm:$0xf]
    %v173 = vld [vmem:[#allocation5 + $0x5c] sm:$0xf]
    %v174 = vld [vmem:[#allocation5 + $0x60] sm:$0xf]
    %v175 = vld [vmem:[#allocation5 + $0x64] sm:$0xf]
    %v176 = vld [vmem:[#allocation5 + $0x68] sm:$0xf]
    %v177 = vld [vmem:[#allocation5 + $0x6c] sm:$0xf]
    %v178 = vld [vmem:[#allocation5 + $0x70] sm:$0xf]
    %v179 = vld [vmem:[#allocation5 + $0x74] sm:$0xf]
    %v180 = vld [vmem:[#allocation5 + $0x78] sm:$0xf]
    %v181 = vld [vmem:[#allocation5 + $0x7c] sm:$0xf]
    %v182 = vld [vmem:[#allocation5 + $0x80] sm:$0xf]
    %v183 = vld [vmem:[#allocation5 + $0x84] sm:$0xf]
    %v184 = vld [vmem:[#allocation5 + $0x88] sm:$0xf]
    %v185 = vld [vmem:[#allocation5 + $0x8c] sm:$0xf]
    %v186 = vld [vmem:[#allocation5 + $0x90] sm:$0xf]
    %v187 = vld [vmem:[#allocation5 + $0x94] sm:$0xf]
    %v188 = vld [vmem:[#allocation5 + $0x98] sm:$0xf]
    %v189 = vld [vmem:[#allocation5 + $0x9c] sm:$0xf]
    %v190 = vld [vmem:[#allocation5 + $0xa0] sm:$0xf]
    %v191 = vld [vmem:[#allocation5 + $0xa4] sm:$0xf]
    %v192 = vld [vmem:[#allocation5 + $0xa8] sm:$0xf]
    %v193 = vld [vmem:[#allocation5 + $0xac] sm:$0xf]
    %v194 = vld [vmem:[#allocation5 + $0xb0] sm:$0xf]
    %v195 = vld [vmem:[#allocation5 + $0xb4] sm:$0xf]
    %v196 = vld [vmem:[#allocation5 + $0xb8] sm:$0xf]
    %v197 = vld [vmem:[#allocation5 + $0xbc] sm:$0xf]
    %v198 = vld [vmem:[#allocation5 + $0xc0] sm:$0xf]
    %v199 = vld [vmem:[#allocation5 + $0xc4] sm:$0xf]
    %v200 = vld [vmem:[#allocation5 + $0xc8] sm:$0xf]
    %v201 = vld [vmem:[#allocation5 + $0xcc] sm:$0xf]
    %v202 = vld [vmem:[#allocation5 + $0xd0] sm:$0xf]
    %v203 = vld [vmem:[#allocation5 + $0xd4] sm:$0xf]
    %v204 = vld [vmem:[#allocation5 + $0xd8] sm:$0xf]
    %v205 = vld [vmem:[#allocation5 + $0xdc] sm:$0xf]
    %v206 = vld [vmem:[#allocation5 + $0xe0] sm:$0xf]
    %v207 = vld [vmem:[#allocation5 + $0xe4] sm:$0xf]
    %v208 = vld [vmem:[#allocation5 + $0xe8] sm:$0xf]
    %v209 = vld [vmem:[#allocation5 + $0xec] sm:$0xf]
    %v210 = vld [vmem:[#allocation5 + $0xf0] sm:$0xf]
    %v211 = vld [vmem:[#allocation5 + $0xf4] sm:$0xf]
    %v212 = vld [vmem:[#allocation5 + $0xf8] sm:$0xf]
    %v213 = vld [vmem:[#allocation5 + $0xfc] sm:$0xf]
    %v214 = vld [vmem:[#allocation5 + $0x100] sm:$0xf]
    %v215 = vld [vmem:[#allocation5 + $0x104] sm:$0xf]
    %v216 = vld [vmem:[#allocation5 + $0x108] sm:$0xf]
    %v217 = vld [vmem:[#allocation5 + $0x10c] sm:$0xf]
    %v218 = vld [vmem:[#allocation5 + $0x110] sm:$0xf]
    %v219 = vld [vmem:[#allocation5 + $0x114] sm:$0xf]
    %v220 = vld [vmem:[#allocation5 + $0x118] sm:$0xf]
    %v221 = vld [vmem:[#allocation5 + $0x11c] sm:$0xf]
    %v222 = vld [vmem:[#allocation5 + $0x120] sm:$0xf]
    %v223 = vld [vmem:[#allocation5 + $0x124] sm:$0xf]
    %v224 = vld [vmem:[#allocation5 + $0x128] sm:$0xf]
    %v225 = vld [vmem:[#allocation5 + $0x12c] sm:$0xf]
    %v226 = vld [vmem:[#allocation5 + $0x130] sm:$0xf]
    %v227 = vld [vmem:[#allocation5 + $0x134] sm:$0xf]
    %v228 = vld [vmem:[#allocation5 + $0x138] sm:$0xf]
    %v229 = vld [vmem:[#allocation5 + $0x13c] sm:$0xf]
    %v230 = vld [vmem:[#allocation5 + $0x140] sm:$0xf]
    %v231 = vld [vmem:[#allocation5 + $0x144] sm:$0xf]
    %v232 = vld [vmem:[#allocation5 + $0x148] sm:$0xf]
    %v233 = vld [vmem:[#allocation5 + $0x14c] sm:$0xf]
    %v234 = vld [vmem:[#allocation5 + $0x150] sm:$0xf]
    %v235 = vld [vmem:[#allocation5 + $0x154] sm:$0xf]
    %v236 = vld [vmem:[#allocation5 + $0x158] sm:$0xf]
    %v237 = vld [vmem:[#allocation5 + $0x15c] sm:$0xf]
    %v238 = vld [vmem:[#allocation5 + $0x160] sm:$0xf]
    %v239 = vld [vmem:[#allocation5 + $0x164] sm:$0xf]
    %v240 = vld [vmem:[#allocation5 + $0x168] sm:$0xf]
    %v241 = vld [vmem:[#allocation5 + $0x16c] sm:$0xf]
    %v242 = vld [vmem:[#allocation5 + $0x170] sm:$0xf]
    %v243 = vld [vmem:[#allocation5 + $0x174] sm:$0xf]
    %v244 = vld [vmem:[#allocation5 + $0x178] sm:$0xf]
    %v245 = vld [vmem:[#allocation5 + $0x17c] sm:$0xf]
    %v246 = vld [vmem:[#allocation5 + $0x180] sm:$0xf]
    %v247 = vld [vmem:[#allocation5 + $0x184] sm:$0xf]
    %v248 = vld [vmem:[%s2] sm:$0x1]
    %v250 = vlaneseq
    %v251 = vshrl.u32 %v250, 7
    %v252 = vsub.s32 0, %v251
    %v253 = vrot.slane %v248, %v252
    %v353 = vunpack.c.l.b16 %v150
    %v354 = vunpack.c.l.b16 %v151
    %v355 = vunpack.c.l.b16 %v152
    %v356 = vunpack.c.l.b16 %v153
    %v357 = vunpack.c.l.b16 %v154
    %v358 = vunpack.c.l.b16 %v155
    %v359 = vunpack.c.l.b16 %v156
    %v360 = vunpack.c.l.b16 %v157
    %v361 = vunpack.c.l.b16 %v158
    %v362 = vunpack.c.l.b16 %v159
    %v363 = vunpack.c.l.b16 %v160
    %v364 = vunpack.c.l.b16 %v161
    %v365 = vunpack.c.l.b16 %v162
    %v366 = vunpack.c.l.b16 %v163
    %v367 = vunpack.c.l.b16 %v164
    %v368 = vunpack.c.l.b16 %v165
    %v369 = vunpack.c.l.b16 %v166
    %v370 = vunpack.c.l.b16 %v167
    %v371 = vunpack.c.l.b16 %v168
    %v372 = vunpack.c.l.b16 %v169
    %v373 = vunpack.c.l.b16 %v170
    %v374 = vunpack.c.l.b16 %v171
    %v375 = vunpack.c.l.b16 %v172
    %v376 = vunpack.c.l.b16 %v173
    %v377 = vunpack.c.l.b16 %v174
    %v378 = vunpack.c.l.b16 %v175
    %v379 = vunpack.c.l.b16 %v176
    %v380 = vunpack.c.l.b16 %v177
    %v381 = vunpack.c.l.b16 %v178
    %v382 = vunpack.c.l.b16 %v179
    %v383 = vunpack.c.l.b16 %v180
    %v384 = vunpack.c.l.b16 %v181
    %v385 = vunpack.c.l.b16 %v182
    %v386 = vunpack.c.l.b16 %v183
    %v387 = vunpack.c.l.b16 %v184
    %v388 = vunpack.c.l.b16 %v185
    %v389 = vunpack.c.l.b16 %v186
    %v390 = vunpack.c.l.b16 %v187
    %v391 = vunpack.c.l.b16 %v188
    %v392 = vunpack.c.l.b16 %v189
    %v393 = vunpack.c.l.b16 %v190
    %v394 = vunpack.c.l.b16 %v191
    %v395 = vunpack.c.l.b16 %v192
    %v396 = vunpack.c.l.b16 %v193
    %v397 = vunpack.c.l.b16 %v194
    %v398 = vunpack.c.l.b16 %v195
    %v399 = vunpack.c.l.b16 %v196
    %v400 = vunpack.c.l.b16 %v197
    %v401 = vunpack.c.l.b16 %v198
    %v402 = vunpack.c.l.b16 %v199
    %v403 = vunpack.c.l.b16 %v200
    %v404 = vunpack.c.l.b16 %v201
    %v405 = vunpack.c.l.b16 %v202
    %v406 = vunpack.c.l.b16 %v203
    %v407 = vunpack.c.l.b16 %v204
    %v408 = vunpack.c.l.b16 %v205
    %v409 = vunpack.c.l.b16 %v206
    %v410 = vunpack.c.l.b16 %v207
    %v411 = vunpack.c.l.b16 %v208
    %v412 = vunpack.c.l.b16 %v209
    %v413 = vunpack.c.l.b16 %v210
    %v414 = vunpack.c.l.b16 %v211
    %v415 = vunpack.c.l.b16 %v212
    %v416 = vunpack.c.l.b16 %v213
    %v417 = vunpack.c.l.b16 %v214
    %v418 = vunpack.c.l.b16 %v215
    %v419 = vunpack.c.l.b16 %v216
    %v420 = vunpack.c.l.b16 %v217
    %v421 = vunpack.c.l.b16 %v218
    %v422 = vunpack.c.l.b16 %v219
    %v423 = vunpack.c.l.b16 %v220
    %v424 = vunpack.c.l.b16 %v221
    %v425 = vunpack.c.l.b16 %v222
    %v426 = vunpack.c.l.b16 %v223
    %v427 = vunpack.c.l.b16 %v224
    %v428 = vunpack.c.l.b16 %v225
    %v429 = vunpack.c.l.b16 %v226
    %v430 = vunpack.c.l.b16 %v227
    %v431 = vunpack.c.l.b16 %v228
    %v432 = vunpack.c.l.b16 %v229
    %v433 = vunpack.c.l.b16 %v230
    %v434 = vunpack.c.l.b16 %v231
    %v435 = vunpack.c.l.b16 %v232
    %v436 = vunpack.c.l.b16 %v233
    %v437 = vunpack.c.l.b16 %v234
    %v438 = vunpack.c.l.b16 %v235
    %v439 = vunpack.c.l.b16 %v236
    %v440 = vunpack.c.l.b16 %v237
    %v441 = vunpack.c.l.b16 %v238
    %v442 = vunpack.c.l.b16 %v239
    %v443 = vunpack.c.l.b16 %v240
    %v444 = vunpack.c.l.b16 %v241
    %v445 = vunpack.c.l.b16 %v242
    %v446 = vunpack.c.l.b16 %v243
    %v447 = vunpack.c.l.b16 %v244
    %v448 = vunpack.c.l.b16 %v245
    %v449 = vunpack.c.l.b16 %v246
    %v450 = vunpack.c.l.b16 %v247
    %v451 = vpack.c.b16 %v354, %v353
    %v452 = vpack.c.b16 %v356, %v355
    %v453 = vpack.c.b16 %v358, %v357
    %v454 = vpack.c.b16 %v360, %v359
    %v455 = vpack.c.b16 %v362, %v361
    %v456 = vpack.c.b16 %v364, %v363
    %v457 = vpack.c.b16 %v366, %v365
    %v458 = vpack.c.b16 %v368, %v367
    %v459 = vpack.c.b16 %v370, %v369
    %v460 = vpack.c.b16 %v372, %v371
    %v461 = vpack.c.b16 %v374, %v373
    %v462 = vpack.c.b16 %v376, %v375
    %v463 = vpack.c.b16 %v378, %v377
    %v464 = vpack.c.b16 %v380, %v379
    %v465 = vpack.c.b16 %v382, %v381
    %v466 = vpack.c.b16 %v384, %v383
    %v467 = vpack.c.b16 %v386, %v385
    %v468 = vpack.c.b16 %v388, %v387
    %v469 = vpack.c.b16 %v390, %v389
    %v470 = vpack.c.b16 %v392, %v391
    %v471 = vpack.c.b16 %v394, %v393
    %v472 = vpack.c.b16 %v396, %v395
    %v473 = vpack.c.b16 %v398, %v397
    %v474 = vpack.c.b16 %v400, %v399
    %v475 = vpack.c.b16 %v402, %v401
    %v476 = vpack.c.b16 %v404, %v403
    %v477 = vpack.c.b16 %v406, %v405
    %v478 = vpack.c.b16 %v408, %v407
    %v479 = vpack.c.b16 %v410, %v409
    %v480 = vpack.c.b16 %v412, %v411
    %v481 = vpack.c.b16 %v414, %v413
    %v482 = vpack.c.b16 %v416, %v415
    %v483 = vpack.c.b16 %v418, %v417
    %v484 = vpack.c.b16 %v420, %v419
    %v485 = vpack.c.b16 %v422, %v421
    %v486 = vpack.c.b16 %v424, %v423
    %v487 = vpack.c.b16 %v426, %v425
    %v488 = vpack.c.b16 %v428, %v427
    %v489 = vpack.c.b16 %v430, %v429
    %v490 = vpack.c.b16 %v432, %v431
    %v491 = vpack.c.b16 %v434, %v433
    %v492 = vpack.c.b16 %v436, %v435
    %v493 = vpack.c.b16 %v438, %v437
    %v494 = vpack.c.b16 %v440, %v439
    %v495 = vpack.c.b16 %v442, %v441
    %v496 = vpack.c.b16 %v444, %v443
    %v497 = vpack.c.b16 %v446, %v445
    %v498 = vpack.c.b16 %v448, %v447
    %v499 = vpack.c.b16 %v450, %v449
    %vm549 = vcmask 130048
    %v551 = vsel %vm549, %v149, 0
    %553 = vmatprep.subr.bf16.mxu0 0
    %554 = vmatpush1.bf16.msra.mxu0 %v451
    %555 = vmatprep.subr.bf16.mxu0 0
    %556 = vmatpush1.bf16.msra.mxu0 %v452
    %557 = vmatprep.subr.bf16.mxu0 0
    %558 = vmatpush1.bf16.msra.mxu0 %v453
    %559 = vmatprep.subr.bf16.mxu0 0
    %560 = vmatpush1.bf16.msra.mxu0 %v454
    %561 = vmatprep.subr.bf16.mxu0 0
    %562 = vmatpush1.bf16.msra.mxu0 %v455
    %563 = vmatprep.subr.bf16.mxu0 0
    %564 = vmatpush1.bf16.msra.mxu0 %v456
    %565 = vmatprep.subr.bf16.mxu0 0
    %566 = vmatpush1.bf16.msra.mxu0 %v457
    %567 = vmatprep.subr.bf16.mxu0 0
    %568 = vmatpush1.bf16.msra.mxu0 %v458
    %569 = vmatprep.subr.bf16.mxu0 0
    %570 = vmatpush1.bf16.msra.mxu0 %v459
    %571 = vmatprep.subr.bf16.mxu0 0
    %572 = vmatpush1.bf16.msra.mxu0 %v460
    %573 = vmatprep.subr.bf16.mxu0 0
    %574 = vmatpush1.bf16.msra.mxu0 %v461
    %575 = vmatprep.subr.bf16.mxu0 0
    %576 = vmatpush1.bf16.msra.mxu0 %v462
    %577 = vmatprep.subr.bf16.mxu0 0
    %578 = vmatpush1.bf16.msra.mxu0 %v463
    %579 = vmatprep.subr.bf16.mxu0 0
    %580 = vmatpush1.bf16.msra.mxu0 %v464
    %581 = vmatprep.subr.bf16.mxu0 0
    %582 = vmatpush1.bf16.msra.mxu0 %v465
    %583 = vmatprep.subr.bf16.mxu0 0
    %584 = vmatpush1.bf16.msra.mxu0 %v466
    %585 = vmatprep.mubr.bf16.mxu0 %v144
    %586 = vmatmul.mubr.bf16.gmra.mrb[0].mxu0 %v143
    %v587 = vpop.f32.mrb[0].mxu0
    %v588 = vadd.f32 %v253, %v587
    %v589 = vpop.f32.mrb[0].mxu0
    %v590 = vpop.f32.mrb[0].mxu0
    %v591 = vadd.f32 %v253, %v590
    %v592 = vpop.f32.mrb[0].mxu0
    %593 = vdwg.mxu0
    %594 = vmatprep.subr.bf16.mxu0 0
    %595 = vmatpush1.bf16.msra.mxu0 %v467
    %596 = vmatprep.subr.bf16.mxu0 0
    %597 = vmatpush1.bf16.msra.mxu0 %v468
    %598 = vmatprep.subr.bf16.mxu0 0
    %599 = vmatpush1.bf16.msra.mxu0 %v469
    %600 = vmatprep.subr.bf16.mxu0 0
    %601 = vmatpush1.bf16.msra.mxu0 %v470
    %602 = vmatprep.subr.bf16.mxu0 0
    %603 = vmatpush1.bf16.msra.mxu0 %v471
    %604 = vmatprep.subr.bf16.mxu0 0
    %605 = vmatpush1.bf16.msra.mxu0 %v472
    %606 = vmatprep.subr.bf16.mxu0 0
    %607 = vmatpush1.bf16.msra.mxu0 %v473
    %608 = vmatprep.subr.bf16.mxu0 0
    %609 = vmatpush1.bf16.msra.mxu0 %v474
    %610 = vmatprep.subr.bf16.mxu0 0
    %611 = vmatpush1.bf16.msra.mxu0 %v475
    %612 = vmatprep.subr.bf16.mxu0 0
    %613 = vmatpush1.bf16.msra.mxu0 %v476
    %614 = vmatprep.subr.bf16.mxu0 0
    %615 = vmatpush1.bf16.msra.mxu0 %v477
    %616 = vmatprep.subr.bf16.mxu0 0
    %617 = vmatpush1.bf16.msra.mxu0 %v478
    %618 = vmatprep.subr.bf16.mxu0 0
    %619 = vmatpush1.bf16.msra.mxu0 %v479
    %620 = vmatprep.subr.bf16.mxu0 0
    %621 = vmatpush1.bf16.msra.mxu0 %v480
    %622 = vmatprep.subr.bf16.mxu0 0
    %623 = vmatpush1.bf16.msra.mxu0 %v481
    %624 = vmatprep.subr.bf16.mxu0 0
    %625 = vmatpush1.bf16.msra.mxu0 %v482
    %626 = vmatprep.mubr.bf16.mxu0 %v146
    %627 = vmatmul.mubr.bf16.gmra.mrb[0].mxu0 %v145
    %v628 = vpop.f32.mrb[0].mxu0
    %v629 = vadd.f32 %v588, %v628
    %v630 = vpop.f32.mrb[0].mxu0
    %v631 = vpop.f32.mrb[0].mxu0
    %v632 = vadd.f32 %v591, %v631
    %v633 = vpop.f32.mrb[0].mxu0
    %634 = vdwg.mxu0
    %635 = vmatprep.subr.bf16.mxu0 0
    %636 = vmatpush1.bf16.msra.mxu0 %v483
    %637 = vmatprep.subr.bf16.mxu0 0
    %638 = vmatpush1.bf16.msra.mxu0 %v484
    %639 = vmatprep.subr.bf16.mxu0 0
    %640 = vmatpush1.bf16.msra.mxu0 %v485
    %641 = vmatprep.subr.bf16.mxu0 0
    %642 = vmatpush1.bf16.msra.mxu0 %v486
    %643 = vmatprep.subr.bf16.mxu0 0
    %644 = vmatpush1.bf16.msra.mxu0 %v487
    %645 = vmatprep.subr.bf16.mxu0 0
    %646 = vmatpush1.bf16.msra.mxu0 %v488
    %647 = vmatprep.subr.bf16.mxu0 0
    %648 = vmatpush1.bf16.msra.mxu0 %v489
    %649 = vmatprep.subr.bf16.mxu0 0
    %650 = vmatpush1.bf16.msra.mxu0 %v490
    %651 = vmatprep.subr.bf16.mxu0 0
    %652 = vmatpush1.bf16.msra.mxu0 %v491
    %653 = vmatprep.subr.bf16.mxu0 0
    %654 = vmatpush1.bf16.msra.mxu0 %v492
    %655 = vmatprep.subr.bf16.mxu0 0
    %656 = vmatpush1.bf16.msra.mxu0 %v493
    %657 = vmatprep.subr.bf16.mxu0 0
    %658 = vmatpush1.bf16.msra.mxu0 %v494
    %659 = vmatprep.subr.bf16.mxu0 0
    %660 = vmatpush1.bf16.msra.mxu0 %v495
    %661 = vmatprep.subr.bf16.mxu0 0
    %662 = vmatpush1.bf16.msra.mxu0 %v496
    %663 = vmatprep.subr.bf16.mxu0 0
    %664 = vmatpush1.bf16.msra.mxu0 %v497
    %665 = vmatprep.subr.bf16.mxu0 0
    %666 = vmatpush1.bf16.msra.mxu0 %v498
    %667 = vmatprep.mubr.bf16.mxu0 %v148
    %668 = vmatmul.mubr.bf16.gmra.mrb[0].mxu0 %v147
    %v669 = vpop.f32.mrb[0].mxu0
    %v670 = vadd.f32 %v629, %v669
    %v671 = vpop.f32.mrb[0].mxu0
    %v672 = vpop.f32.mrb[0].mxu0
    %v673 = vadd.f32 %v632, %v672
    %v674 = vpop.f32.mrb[0].mxu0
    %675 = vdwg.mxu0
    %676 = vmatprep.subr.bf16.mxu0 0
    %677 = vmatpush1.bf16.msra.mxu0 %v499
    %678 = vmatprep.subr.bf16.mxu0 0
    %679 = vmatpush1.bf16.msra.mxu0 0
    %680 = vmatprep.subr.bf16.mxu0 0
    %681 = vmatpush1.bf16.msra.mxu0 0
    %682 = vmatprep.subr.bf16.mxu0 0
    %683 = vmatpush1.bf16.msra.mxu0 0
    %684 = vmatprep.subr.bf16.mxu0 0
    %685 = vmatpush1.bf16.msra.mxu0 0
    %686 = vmatprep.subr.bf16.mxu0 0
    %687 = vmatpush1.bf16.msra.mxu0 0
    %688 = vmatprep.subr.bf16.mxu0 0
    %689 = vmatpush1.bf16.msra.mxu0 0
    %690 = vmatprep.subr.bf16.mxu0 0
    %691 = vmatpush1.bf16.msra.mxu0 0
    %692 = vmatprep.subr.bf16.mxu0 0
    %693 = vmatpush1.bf16.msra.mxu0 0
    %694 = vmatprep.subr.bf16.mxu0 0
    %695 = vmatpush1.bf16.msra.mxu0 0
    %696 = vmatprep.subr.bf16.mxu0 0
    %697 = vmatpush1.bf16.msra.mxu0 0
    %698 = vmatprep.subr.bf16.mxu0 0
    %699 = vmatpush1.bf16.msra.mxu0 0
    %700 = vmatprep.subr.bf16.mxu0 0
    %701 = vmatpush1.bf16.msra.mxu0 0
    %702 = vmatprep.subr.bf16.mxu0 0
    %703 = vmatpush1.bf16.msra.mxu0 0
    %704 = vmatprep.subr.bf16.mxu0 0
    %705 = vmatpush1.bf16.msra.mxu0 0
    %706 = vmatprep.subr.bf16.mxu0 0
    %707 = vmatpush1.bf16.msra.mxu0 0
    %708 = vmatprep.mubr.bf16.mxu0 0
    %709 = vmatmul.mubr.bf16.gmra.mrb[0].mxu0 %v551
    %v710 = vpop.f32.mrb[0].mxu0
    %v711 = vadd.f32 %v670, %v710
    %v712 = vpop.f32.mrb[0].mxu0
    %v713 = vpop.f32.mrb[0].mxu0
    %v714 = vadd.f32 %v673, %v713
    %v715 = vpop.f32.mrb[0].mxu0
    %716 = vdwg.mxu0
    %v717 = vmax.f32 %v711, 0.0
    %v718 = vmax.f32 %v714, 0.0
    %v719 = vpack.c.bf16 %v718, %v717
    %v720 = vld [vmem:[#allocation7] sm:$0xf]
    %v721 = vld [vmem:[#allocation7 + $0x4] sm:$0xf]
    %v722 = vld [vmem:[#allocation7 + $0x8] sm:$0xf]
    %v723 = vld [vmem:[#allocation7 + $0xc] sm:$0xf]
    %v724 = vld [vmem:[#allocation7 + $0x10] sm:$0xf]
    %v725 = vld [vmem:[#allocation7 + $0x14] sm:$0xf]
    %v726 = vld [vmem:[#allocation7 + $0x18] sm:$0xf]
    %v727 = vld [vmem:[#allocation7 + $0x1c] sm:$0xf]
    %v728 = vld [vmem:[#allocation7 + $0x20] sm:$0xf]
    %v729 = vld [vmem:[#allocation7 + $0x24] sm:$0xf]
    %v730 = vld [vmem:[#allocation7 + $0x28] sm:$0xf]
    %v731 = vld [vmem:[#allocation7 + $0x2c] sm:$0xf]
    %v732 = vld [vmem:[#allocation7 + $0x30] sm:$0xf]
    %v733 = vld [vmem:[#allocation7 + $0x34] sm:$0xf]
    %v734 = vld [vmem:[#allocation7 + $0x38] sm:$0xf]
    %v735 = vld [vmem:[#allocation7 + $0x3c] sm:$0xf]
    %v736 = vld [vmem:[%s4] sm:$0x1]
    %v738 = vlaneseq
    %v739 = vshrl.u32 %v738, 7
    %v740 = vsub.s32 0, %v739
    %v741 = vrot.slane %v736, %v740
    %v759 = vunpack.c.l.b16 %v720
    %v760 = vunpack.c.l.b16 %v721
    %v761 = vunpack.c.l.b16 %v722
    %v762 = vunpack.c.l.b16 %v723
    %v763 = vunpack.c.l.b16 %v724
    %v764 = vunpack.c.l.b16 %v725
    %v765 = vunpack.c.l.b16 %v726
    %v766 = vunpack.c.l.b16 %v727
    %v767 = vunpack.c.l.b16 %v728
    %v768 = vunpack.c.l.b16 %v729
    %v769 = vunpack.c.l.b16 %v730
    %v770 = vunpack.c.l.b16 %v731
    %v771 = vunpack.c.l.b16 %v732
    %v772 = vunpack.c.l.b16 %v733
    %v773 = vunpack.c.l.b16 %v734
    %v774 = vunpack.c.l.b16 %v735
    %v775 = vpack.c.b16 %v760, %v759
    %v776 = vpack.c.b16 %v762, %v761
    %v777 = vpack.c.b16 %v764, %v763
    %v778 = vpack.c.b16 %v766, %v765
    %v779 = vpack.c.b16 %v768, %v767
    %v780 = vpack.c.b16 %v770, %v769
    %v781 = vpack.c.b16 %v772, %v771
    %v782 = vpack.c.b16 %v774, %v773
    %791 = vmatprep.subr.bf16.mxu0 0
    %792 = vmatpush1.bf16.msra.mxu0 %v775
    %793 = vmatprep.subr.bf16.mxu0 0
    %794 = vmatpush1.bf16.msra.mxu0 %v776
    %795 = vmatprep.subr.bf16.mxu0 0
    %796 = vmatpush1.bf16.msra.mxu0 %v777
    %797 = vmatprep.subr.bf16.mxu0 0
    %798 = vmatpush1.bf16.msra.mxu0 %v778
    %799 = vmatprep.subr.bf16.mxu0 0
    %800 = vmatpush1.bf16.msra.mxu0 %v779
    %801 = vmatprep.subr.bf16.mxu0 0
    %802 = vmatpush1.bf16.msra.mxu0 %v780
    %803 = vmatprep.subr.bf16.mxu0 0
    %804 = vmatpush1.bf16.msra.mxu0 %v781
    %805 = vmatprep.subr.bf16.mxu0 0
    %806 = vmatpush1.bf16.msra.mxu0 %v782
    %807 = vmatprep.subr.bf16.mxu0 0
    %808 = vmatpush1.bf16.msra.mxu0 0
    %809 = vmatprep.subr.bf16.mxu0 0
    %810 = vmatpush1.bf16.msra.mxu0 0
    %811 = vmatprep.subr.bf16.mxu0 0
    %812 = vmatpush1.bf16.msra.mxu0 0
    %813 = vmatprep.subr.bf16.mxu0 0
    %814 = vmatpush1.bf16.msra.mxu0 0
    %815 = vmatprep.subr.bf16.mxu0 0
    %816 = vmatpush1.bf16.msra.mxu0 0
    %817 = vmatprep.subr.bf16.mxu0 0
    %818 = vmatpush1.bf16.msra.mxu0 0
    %819 = vmatprep.subr.bf16.mxu0 0
    %820 = vmatpush1.bf16.msra.mxu0 0
    %821 = vmatprep.subr.bf16.mxu0 0
    %822 = vmatpush1.bf16.msra.mxu0 0
    %823 = vmatprep.mubr.bf16.mxu0 0
    %824 = vmatmul.mubr.bf16.gmra.mrb[0].mxu0 %v719
    %v825 = vpop.f32.mrb[0].mxu0
    %v826 = vadd.f32 %v741, %v825
    %v827 = vpop.f32.mrb[0].mxu0
    %v828 = vpop.f32.mrb[0].mxu0
    %v829 = vadd.f32 %v741, %v828
    %v830 = vpop.f32.mrb[0].mxu0
    %831 = vdwg.mxu0
    %v832 = vmax.f32 %v826, 0.0
    %v833 = vmax.f32 %v829, 0.0
    %v834 = vpack.c.bf16 %v833, %v832
    %v835 = vld [vmem:[#allocation8] sm:$0xf]
    %v836 = vld [vmem:[#allocation8 + $0x4] sm:$0xf]
    %v837 = vld [vmem:[#allocation8 + $0x8] sm:$0xf]
    %v838 = vld [vmem:[#allocation8 + $0xc] sm:$0xf]
    %v839 = vld [vmem:[#allocation8 + $0x10] sm:$0xf]
    %v840 = vld [vmem:[#allocation8 + $0x14] sm:$0xf]
    %v841 = vld [vmem:[#allocation8 + $0x18] sm:$0xf]
    %v842 = vld [vmem:[#allocation8 + $0x1c] sm:$0xf]
    %v843 = vld [vmem:[#allocation8 + $0x20] sm:$0xf]
    %v844 = vld [vmem:[#allocation8 + $0x24] sm:$0xf]
    %v845 = vld [vmem:[#allocation8 + $0x28] sm:$0xf]
    %v846 = vld [vmem:[#allocation8 + $0x2c] sm:$0xf]
    %v847 = vld [vmem:[#allocation8 + $0x30] sm:$0xf]
    %v848 = vld [vmem:[#allocation8 + $0x34] sm:$0xf]
    %v849 = vld [vmem:[#allocation8 + $0x38] sm:$0xf]
    %v850 = vld [vmem:[#allocation8 + $0x3c] sm:$0xf]
    %v851 = vld [vmem:[%s6] sm:$0x1]
    %v853 = vlaneseq
    %v854 = vshrl.u32 %v853, 7
    %v855 = vsub.s32 0, %v854
    %v856 = vrot.slane %v851, %v855
    %v874 = vunpack.c.l.b16 %v835
    %v875 = vunpack.c.l.b16 %v836
    %v876 = vunpack.c.l.b16 %v837
    %v877 = vunpack.c.l.b16 %v838
    %v878 = vunpack.c.l.b16 %v839
    %v879 = vunpack.c.l.b16 %v840
    %v880 = vunpack.c.l.b16 %v841
    %v881 = vunpack.c.l.b16 %v842
    %v882 = vunpack.c.l.b16 %v843
    %v883 = vunpack.c.l.b16 %v844
    %v884 = vunpack.c.l.b16 %v845
    %v885 = vunpack.c.l.b16 %v846
    %v886 = vunpack.c.l.b16 %v847
    %v887 = vunpack.c.l.b16 %v848
    %v888 = vunpack.c.l.b16 %v849
    %v889 = vunpack.c.l.b16 %v850
    %v890 = vpack.c.b16 %v875, %v874
    %v891 = vpack.c.b16 %v877, %v876
    %v892 = vpack.c.b16 %v879, %v878
    %v893 = vpack.c.b16 %v881, %v880
    %v894 = vpack.c.b16 %v883, %v882
    %v895 = vpack.c.b16 %v885, %v884
    %v896 = vpack.c.b16 %v887, %v886
    %v897 = vpack.c.b16 %v889, %v888
    %906 = vmatprep.subr.bf16.mxu0 0
    %907 = vmatpush1.bf16.msra.mxu0 %v890
    %908 = vmatprep.subr.bf16.mxu0 0
    %909 = vmatpush1.bf16.msra.mxu0 %v891
    %910 = vmatprep.subr.bf16.mxu0 0
    %911 = vmatpush1.bf16.msra.mxu0 %v892
    %912 = vmatprep.subr.bf16.mxu0 0
    %913 = vmatpush1.bf16.msra.mxu0 %v893
    %914 = vmatprep.subr.bf16.mxu0 0
    %915 = vmatpush1.bf16.msra.mxu0 %v894
    %916 = vmatprep.subr.bf16.mxu0 0
    %917 = vmatpush1.bf16.msra.mxu0 %v895
    %918 = vmatprep.subr.bf16.mxu0 0
    %919 = vmatpush1.bf16.msra.mxu0 %v896
    %920 = vmatprep.subr.bf16.mxu0 0
    %921 = vmatpush1.bf16.msra.mxu0 %v897
    %922 = vmatprep.subr.bf16.mxu0 0
    %923 = vmatpush1.bf16.msra.mxu0 0
    %924 = vmatprep.subr.bf16.mxu0 0
    %925 = vmatpush1.bf16.msra.mxu0 0
    %926 = vmatprep.subr.bf16.mxu0 0
    %927 = vmatpush1.bf16.msra.mxu0 0
    %928 = vmatprep.subr.bf16.mxu0 0
    %929 = vmatpush1.bf16.msra.mxu0 0
    %930 = vmatprep.subr.bf16.mxu0 0
    %931 = vmatpush1.bf16.msra.mxu0 0
    %932 = vmatprep.subr.bf16.mxu0 0
    %933 = vmatpush1.bf16.msra.mxu0 0
    %934 = vmatprep.subr.bf16.mxu0 0
    %935 = vmatpush1.bf16.msra.mxu0 0
    %936 = vmatprep.subr.bf16.mxu0 0
    %937 = vmatpush1.bf16.msra.mxu0 0
    %938 = vmatprep.mubr.bf16.mxu0 0
    %939 = vmatmul.mubr.bf16.gmra.mrb[0].mxu0 %v834
    %v940 = vpop.f32.mrb[0].mxu0
    %v941 = vadd.f32 %v856, %v940
    %v942 = vpop.f32.mrb[0].mxu0
    %v943 = vpop.f32.mrb[0].mxu0
    %v944 = vadd.f32 %v856, %v943
    %v945 = vpop.f32.mrb[0].mxu0
    %946 = vdwg.mxu0
    %947 = vmax.xlane.f32.xlu0 %v941
    %v948 = vpop.xlane.xlu0 %947
    %949 = vmax.xlane.f32.xlu0 %v944
    %v950 = vpop.xlane.xlu0 %949
    %v951 = vsub.f32 %v941, %v948
    %v952 = vsub.f32 %v944, %v950
    %v953 = vmul.f32 %v951, 1.442695
    %v954 = vpow.pop %v953
    %v955 = vmul.f32 %v952, 1.442695
    %v956 = vpow.pop %v955
    %957 = vadd.xlane.f32.xlu0 %v954
    %v958 = vpop.xlane.xlu0 %957
    %959 = vadd.xlane.f32.xlu0 %v956
    %v960 = vpop.xlane.xlu0 %959
    %v961 = vlog2.pop %v958
    %v962 = vmul.f32 %v961, 0.6931472
    %v963 = vlog2.pop %v960
    %v964 = vmul.f32 %v963, 0.6931472
    %v965 = vsub.f32 %v951, %v962
    %v966 = vsub.f32 %v952, %v964
    %967 = vst [vmem:[#allocation10] sm:$0xff] %v965
    %968 = vst [vmem:[#allocation10 + $0x8] sm:$0xff] %v966
    // Predicated region
    $region46: #{tpu_custom_call.1} parent=1 // pred_check
      _
    $region47: #{tpu_custom_call.1} parent=1 // pred_check_branch
      %970 = sbr.rel (0) target = $region49
    $region48: #{tpu_custom_call.1} parent=1 // pred_region
      %s972 = ssub.s32 256, 64
      %973 = vsyncadd [#allocation4], %s972
      %s974 = sshll.u32 [#allocation10], 4
      %s975 = int_to_ptr.vmem [resolvable:$true] %s974
      %980 = dma.vmem_to_hbm [thread:$0]  %s975, 64, %s7, [#allocation4], 64, 64, 4
    $region49: #{tpu_custom_call.1} parent=1 // pred_fallthru
      _
    // Predicated region
    $region50: #{tpu_custom_call.1} parent=1 // pred_check
      _
    $region51: #{tpu_custom_call.1} parent=1 // pred_check_branch
      %982 = sbr.rel (0) target = $region53
    $region52: #{tpu_custom_call.1} parent=1 // pred_region
      %983 = dma.done [#allocation4], 256
    $region53: #{tpu_custom_call.1} parent=1 // pred_fallthru
      _
    %984 = vsyncpa [#allocation3], 1
    %985 = vsyncpa [#allocation6], 1
    %986 = vsyncpa [#allocation9], 1
    %987 = vsyncpa [#allocation4], 1

</llo_original>
